<compile_context>
chip_gen: v7x
topology: tpu7x:2x2x1
jax: 0.10.0
libtpu: 0.0.40
codegen_flags: <defaults>
</compile_context>

<pallas_src>
import jax
import jax.numpy as jnp
from jax.experimental import pallas as pl
from jax.experimental.pallas import tpu as pltpu


def _round_up(x, m):
    return ((x + m - 1) // m) * m


def actor_critic_kernel(x_ref, wt_ref, bt_ref, wh_ref, bh_ref, out_ref):
    # Fused trunk: one [TB, D] @ [D, 2H] matmul covers both pi1 and v1.
    x = x_ref[...]                                                   # [TB, D]
    h = jnp.dot(x, wt_ref[...], preferred_element_type=jnp.float32) + bt_ref[...]
    h = jnp.maximum(h, 0.0)            # [:, :H] = relu(pi1), [:, H:] = relu(v1)

    # Fused heads: block-diagonal [2H, HP] weight (w_pi in rows :H / cols :A,
    # w_v in rows H: / col A). Exact zeros elsewhere -> no cross-contamination.
    # HP = 128 -> lane-dense, unmasked vector stores.
    out_ref[...] = (jnp.dot(h, wh_ref[...], preferred_element_type=jnp.float32)
                    + bh_ref[...])                                   # [TB, HP]


def fuse_params(p, pad_cols=128):
    """Pack per-layer params into the fused/padded layout (done once, offline)."""
    D, H = p["w_pi1"].shape
    A = p["w_pi"].shape[1]
    HP = _round_up(A + 1, pad_cols)                                  # lane-dense width

    w_trunk = jnp.concatenate([p["w_pi1"], p["w_v1"]], axis=1)       # [D, 2H]
    b_trunk = jnp.concatenate([p["b_pi1"], p["b_v1"]], axis=1)       # [1, 2H]

    w_head = jnp.zeros((2 * H, HP), jnp.float32)
    w_head = w_head.at[:H, :A].set(p["w_pi"])                        # pi block
    w_head = w_head.at[H:, A:A + 1].set(p["w_v"])                    # v block
    b_head = jnp.zeros((1, HP), jnp.float32)
    b_head = b_head.at[:, :A].set(p["b_pi"])
    b_head = b_head.at[:, A:A + 1].set(p["b_v"])
    return dict(w_trunk=w_trunk, b_trunk=b_trunk, w_head=w_head, b_head=b_head)


def actor_critic_forward(x, fused, n_actions):
    """x: [B, D] float32. fused: output of fuse_params. Returns (pi [B,A], v [B,1])."""
    B, D = x.shape
    w_trunk, b_trunk = fused["w_trunk"], fused["b_trunk"]
    w_head, b_head = fused["w_head"], fused["b_head"]
    H2 = w_trunk.shape[1]                                            # 2 * hidden
    HP = w_head.shape[1]                                             # padded head width

    # Batch tiling: sublane-align B, tile so the design scales to large B while
    # keeping well under the v7x 64 MiB VMEM budget. At B=8 -> one grid step.
    TB = min(_round_up(B, 8), 256)
    B_pad = _round_up(_round_up(B, 8), TB)
    if B_pad != B:
        x = jnp.pad(x, ((0, B_pad - B), (0, 0)))
    grid = (B_pad // TB,)

    resident = lambda i: (0, 0)   # weights / biases stay VMEM-resident across steps

    flops = 2 * B_pad * (D * H2 + H2 * HP)
    bytes_accessed = 4 * (B_pad * D + D * H2 + H2 + H2 * HP + HP + B_pad * HP)

    out = pl.pallas_call(
        actor_critic_kernel,
        out_shape=jax.ShapeDtypeStruct((B_pad, HP), jnp.float32),
        grid_spec=pltpu.PrefetchScalarGridSpec(
            num_scalar_prefetch=0,
            grid=grid,
            in_specs=[
                pl.BlockSpec((TB, D), lambda i: (i, 0)),     # x tile
                pl.BlockSpec((D, H2), resident),             # fused trunk W
                pl.BlockSpec((1, H2), resident),             # fused trunk b
                pl.BlockSpec((H2, HP), resident),            # fused head W
                pl.BlockSpec((1, HP), resident),             # fused head b
            ],
            out_specs=pl.BlockSpec((TB, HP), lambda i: (i, 0)),
        ),
        compiler_params=pltpu.CompilerParams(
            dimension_semantics=("parallel",)),               # shard batch on v7x 2 TCs
        cost_estimate=pl.CostEstimate(
            flops=flops, transcendentals=0, bytes_accessed=bytes_accessed),
    )(x, w_trunk, b_trunk, w_head, b_head)

    pi = out[:B, :n_actions]
    v = out[:B, n_actions:n_actions + 1]
    return pi, v


def init_params(key, input_dim, hidden, n_actions):
    """Deterministic synthetic init. Weights stored as [in, out] (transposed vs.
    PyTorch's [out, in]); biases as [1, out] for broadcasting."""
    ks = jax.random.split(key, 8)

    def lin(kw, kb, fan_in, fan_out):
        bound = 1.0 / jnp.sqrt(fan_in)
        w = jax.random.uniform(kw, (fan_in, fan_out), jnp.float32, -bound, bound)
        b = jax.random.uniform(kb, (1, fan_out), jnp.float32, -bound, bound)
        return w, b

    w_pi1, b_pi1 = lin(ks[0], ks[1], input_dim, hidden)
    w_v1, b_v1 = lin(ks[2], ks[3], input_dim, hidden)
    w_pi, b_pi = lin(ks[4], ks[5], hidden, n_actions)
    w_v, b_v = lin(ks[6], ks[7], hidden, 1)
    return dict(w_pi1=w_pi1, b_pi1=b_pi1, w_v1=w_v1, b_v1=b_v1,
                w_pi=w_pi, b_pi=b_pi, w_v=w_v, b_v=b_v)


def reference_forward(x, p):
    pi1 = jnp.maximum(x @ p["w_pi1"] + p["b_pi1"], 0.0)
    v1 = jnp.maximum(x @ p["w_v1"] + p["b_v1"], 0.0)
    return pi1 @ p["w_pi"] + p["b_pi"], v1 @ p["w_v"] + p["b_v"]


if __name__ == "__main__":
    # Small shapes consistent with the module: input_dims=(8,), n_actions=4.
    B, D, H, A = 8, 8, 128, 4

    key = jax.random.PRNGKey(0)
    k_x, k_p = jax.random.split(key)
    x = jax.random.normal(k_x, (B, D), dtype=jnp.float32)
    params = init_params(k_p, D, H, A)
    fused = fuse_params(params)          # one-time packing, not per forward call

    pi, v = jax.block_until_ready(actor_critic_forward(x, fused, A))

    # Sanity-check against a pure-JAX reference of the same forward pass.
    pi_ref, v_ref = reference_forward(x, params)
    assert pi.shape == (B, A) and v.shape == (B, 1)
    assert jnp.allclose(pi, pi_ref, atol=1e-5, rtol=1e-5)
    assert jnp.allclose(v, v_ref, atol=1e-5, rtol=1e-5)

    print("KERNEL_OK")
</pallas_src>

<mosaic_0001>
module attributes {stable_mosaic.version = 11 : i64} {
  func.func @actor_critic_kernel(%arg0: i32, %arg1: memref<8x8xf32, #tpu.memory_space<vmem>>, %arg2: memref<8x256xf32, #tpu.memory_space<vmem>>, %arg3: memref<1x256xf32, #tpu.memory_space<vmem>>, %arg4: memref<256x128xf32, #tpu.memory_space<vmem>>, %arg5: memref<1x128xf32, #tpu.memory_space<vmem>>, %arg6: memref<8x128xf32, #tpu.memory_space<vmem>>) attributes {dimension_semantics = [#tpu.dimension_semantics<parallel>], iteration_bounds = array<i64: 1>, scalar_prefetch = 0 : i64, scratch_operands = 0 : i64, tpu.core_type = #tpu.core_type<tc>, window_params = [{transform_indices = @transform_0, window_bounds = array<i64: 8, 8>}, {pipeline_mode = #tpu.pipeline_mode<synchronous>, transform_indices = @transform_1, window_bounds = array<i64: 8, 256>}, {pipeline_mode = #tpu.pipeline_mode<synchronous>, transform_indices = @transform_2, window_bounds = array<i64: 1, 256>}, {pipeline_mode = #tpu.pipeline_mode<synchronous>, transform_indices = @transform_3, window_bounds = array<i64: 256, 128>}, {pipeline_mode = #tpu.pipeline_mode<synchronous>, transform_indices = @transform_4, window_bounds = array<i64: 1, 128>}, {transform_indices = @transform_5, window_bounds = array<i64: 8, 128>}]} {
    %c0 = arith.constant 0 : index
    %c0_0 = arith.constant 0 : index
    %0 = vector.load %arg1[%c0, %c0_0] : memref<8x8xf32, #tpu.memory_space<vmem>>, vector<8x8xf32>
    %c0_1 = arith.constant 0 : index
    %c0_2 = arith.constant 0 : index
    %1 = vector.load %arg2[%c0_1, %c0_2] : memref<8x256xf32, #tpu.memory_space<vmem>>, vector<8x256xf32>
    %cst = arith.constant dense<0.000000e+00> : vector<8x256xf32>
    %2 = tpu.matmul %0, %1, %cst {dimension_numbers = #tpu.dot_dimension_numbers<[1], [0], [0], [1], [0, 0, 1, 1], [], []>} : vector<8x8xf32>, vector<8x256xf32>, vector<8x256xf32> -> vector<8x256xf32>
    %c0_3 = arith.constant 0 : index
    %c0_4 = arith.constant 0 : index
    %3 = vector.load %arg3[%c0_3, %c0_4] : memref<1x256xf32, #tpu.memory_space<vmem>>, vector<1x256xf32>
    %4 = vector.broadcast %3 : vector<1x256xf32> to vector<8x256xf32>
    %5 = arith.addf %2, %4 : vector<8x256xf32>
    %cst_5 = arith.constant 0.000000e+00 : f32
    %6 = vector.broadcast %cst_5 : f32 to vector<8x256xf32>
    %7 = arith.maximumf %5, %6 : vector<8x256xf32>
    %c0_6 = arith.constant 0 : index
    %c0_7 = arith.constant 0 : index
    %8 = vector.load %arg4[%c0_6, %c0_7] : memref<256x128xf32, #tpu.memory_space<vmem>>, vector<256x128xf32>
    %cst_8 = arith.constant dense<0.000000e+00> : vector<8x128xf32>
    %9 = tpu.matmul %7, %8, %cst_8 {dimension_numbers = #tpu.dot_dimension_numbers<[1], [0], [0], [1], [0, 0, 1, 1], [], []>} : vector<8x256xf32>, vector<256x128xf32>, vector<8x128xf32> -> vector<8x128xf32>
    %c0_9 = arith.constant 0 : index
    %c0_10 = arith.constant 0 : index
    %10 = vector.load %arg5[%c0_9, %c0_10] : memref<1x128xf32, #tpu.memory_space<vmem>>, vector<1x128xf32>
    %11 = vector.broadcast %10 : vector<1x128xf32> to vector<8x128xf32>
    %12 = arith.addf %9, %11 : vector<8x128xf32>
    %c0_11 = arith.constant 0 : index
    %c0_12 = arith.constant 0 : index
    %13 = vector.load %arg6[%c0_11, %c0_12] : memref<8x128xf32, #tpu.memory_space<vmem>>, vector<8x128xf32>
    tpu.vector_store %arg6[%c0_11, %c0_12], %12 {strides = array<i32>} : memref<8x128xf32, #tpu.memory_space<vmem>>, vector<8x128xf32>,
    return
  }
  func.func @transform_0(%arg0: i32) -> (i32, i32) {
    %c0_i32 = arith.constant 0 : i32
    %c0_i32_0 = arith.constant 0 : i32
    return %arg0, %c0_i32 : i32, i32
  }
  func.func @transform_1(%arg0: i32) -> (i32, i32) {
    %c0_i32 = arith.constant 0 : i32
    %c0_i32_0 = arith.constant 0 : i32
    %c0_i32_1 = arith.constant 0 : i32
    return %c0_i32, %c0_i32_0 : i32, i32
  }
  func.func @transform_2(%arg0: i32) -> (i32, i32) {
    %c0_i32 = arith.constant 0 : i32
    %c0_i32_0 = arith.constant 0 : i32
    %c0_i32_1 = arith.constant 0 : i32
    return %c0_i32, %c0_i32_0 : i32, i32
  }
  func.func @transform_3(%arg0: i32) -> (i32, i32) {
    %c0_i32 = arith.constant 0 : i32
    %c0_i32_0 = arith.constant 0 : i32
    %c0_i32_1 = arith.constant 0 : i32
    return %c0_i32, %c0_i32_0 : i32, i32
  }
  func.func @transform_4(%arg0: i32) -> (i32, i32) {
    %c0_i32 = arith.constant 0 : i32
    %c0_i32_0 = arith.constant 0 : i32
    %c0_i32_1 = arith.constant 0 : i32
    return %c0_i32, %c0_i32_0 : i32, i32
  }
  func.func @transform_5(%arg0: i32) -> (i32, i32) {
    %c0_i32 = arith.constant 0 : i32
    %c0_i32_0 = arith.constant 0 : i32
    return %arg0, %c0_i32 : i32, i32
  }
}

</mosaic_0001>

<llo_original>
// kernel: tpu_custom_call.1
$region0: #{tpu_custom_call.1}
  #allocation0 [shape = 'u32[]', space=smem, size = 0x4, offset = 0x4, fixed_abs, tag = 'smem constant byte address 0x4 - core index']
  #allocation1 [shape = 'u32[144,128]{1,0:T(1,128)}', space=vmem, size = 0x12000, scoped, tag = 'internal scratch']
  %s0 = inlined_call_operand.hbm [shape: f32[8,8], index: 0, kind: input, shape index: {}]
  %s1 = inlined_call_operand.hbm [shape: f32[8,256], index: 1, kind: input, shape index: {}]
  %s2 = inlined_call_operand.vmem [shape: f32[1,256], index: 2, kind: input, shape index: {}]
  %s3 = inlined_call_operand.hbm [shape: f32[256,128], index: 3, kind: input, shape index: {}]
  %s4 = inlined_call_operand.vmem [shape: f32[1,128], index: 4, kind: input, shape index: {}]
  %s5 = inlined_call_operand.hbm [shape: f32[8,128], index: 5, kind: output, shape index: {}]
  %s6 = sld [smem:[#allocation0]]
  $region42: #{tpu_custom_call.1} parent=0
    _
  %s8 = ssub.s32 1, %s6
  %s9 = scalar_select 0, %s8, %s6
  $region1: #{tpu_custom_call.1} parent=0
    #allocation2 [shape = 'u8[4096]{0}', space=vmem, size = 0x1000, scoped, tag = 'input window, operand 0, single buffered']
    #allocation3 [shape = 's32[1]{0}', space=sflag, size = 0x4, scoped, tag = 'scoped memory for tpu_custom_call.1']
    #allocation4 [shape = 's32[1]{0}', space=sflag, size = 0x4, scoped, tag = 'scoped memory for tpu_custom_call.1']
    #allocation5 [shape = 'u8[8192]{0}', space=vmem, size = 0x2000, scoped, tag = 'input window, operand 1, single buffered']
    #allocation6 [shape = 's32[1]{0}', space=sflag, size = 0x4, scoped, tag = 'scoped memory for tpu_custom_call.1']
    #allocation7 [shape = 'u8[131072]{0}', space=vmem, size = 0x20000, scoped, tag = 'input window, operand 3, single buffered']
    #allocation8 [shape = 'u8[4096]{0}', space=vmem, size = 0x1000, scoped, tag = 'output window, operand 0, single buffered']
    %10 = vsyncpa [#allocation3], 0
    %11 = vsyncpa [#allocation6], 0
    %12 = vsyncpa [#allocation4], 0
    // Predicated region
    $region2: #{tpu_custom_call.1} parent=1 // pred_check
      _
    $region3: #{tpu_custom_call.1} parent=1 // pred_check_branch
      %14 = sbr.rel (0) target = $region5
    $region4: #{tpu_custom_call.1} parent=1 // pred_region
      %s16 = ssub.s32 128, 128
      %17 = vsyncadd [#allocation3], %s16
      %s19 = sshll.u32 [#allocation2], 4
      %s20 = int_to_ptr.vmem [resolvable:$true] %s19
      %22 = dma.hbm_to_vmem [thread:$0]  %s0, 128, %s20, [#allocation3]
    $region5: #{tpu_custom_call.1} parent=1 // pred_fallthru
      _
    // Predicated region
    $region6: #{tpu_custom_call.1} parent=1 // pred_check
      _
    $region7: #{tpu_custom_call.1} parent=1 // pred_check_branch
      %24 = sbr.rel (0) target = $region9
    $region8: #{tpu_custom_call.1} parent=1 // pred_region
      %s26 = ssub.s32 256, 256
      %27 = vsyncadd [#allocation6], %s26
      %s29 = sshll.u32 [#allocation5], 4
      %s30 = int_to_ptr.vmem [resolvable:$true] %s29
      %32 = dma.hbm_to_vmem [thread:$0]  %s1, 256, %s30, [#allocation6]
    $region9: #{tpu_custom_call.1} parent=1 // pred_fallthru
      _
    // Predicated region
    $region10: #{tpu_custom_call.1} parent=1 // pred_check
      _
    $region11: #{tpu_custom_call.1} parent=1 // pred_check_branch
      %34 = sbr.rel (0) target = $region13
    $region12: #{tpu_custom_call.1} parent=1 // pred_region
      _
    $region13: #{tpu_custom_call.1} parent=1 // pred_fallthru
      _
    // Predicated region
    $region14: #{tpu_custom_call.1} parent=1 // pred_check
      _
    $region15: #{tpu_custom_call.1} parent=1 // pred_check_branch
      %36 = sbr.rel (0) target = $region17
    $region16: #{tpu_custom_call.1} parent=1 // pred_region
      %s38 = ssub.s32 4096, 4096
      %39 = vsyncadd [#allocation6], %s38
      %s40 = sshll.u32 [#allocation7], 4
      %s41 = int_to_ptr.vmem [resolvable:$true] %s40
      %46 = dma.hbm_to_vmem [thread:$0]  %s3, 4096, %s41, [#allocation6], 128, 128, 8
    $region17: #{tpu_custom_call.1} parent=1 // pred_fallthru
      _
    // Predicated region
    $region18: #{tpu_custom_call.1} parent=1 // pred_check
      _
    $region19: #{tpu_custom_call.1} parent=1 // pred_check_branch
      %48 = sbr.rel (0) target = $region21
    $region20: #{tpu_custom_call.1} parent=1 // pred_region
      _
    $region21: #{tpu_custom_call.1} parent=1 // pred_fallthru
      _
    // Predicated region
    $region22: #{tpu_custom_call.1} parent=1 // pred_check
      _
    $region23: #{tpu_custom_call.1} parent=1 // pred_check_branch
      %50 = sbr.rel (0) target = $region25
    $region24: #{tpu_custom_call.1} parent=1 // pred_region
      %51 = dma.done [#allocation3], 128
    $region25: #{tpu_custom_call.1} parent=1 // pred_fallthru
      _
    // Predicated region
    $region26: #{tpu_custom_call.1} parent=1 // pred_check
      _
    $region27: #{tpu_custom_call.1} parent=1 // pred_check_branch
      %53 = sbr.rel (0) target = $region29
    $region28: #{tpu_custom_call.1} parent=1 // pred_region
      %54 = dma.done [#allocation6], 256
    $region29: #{tpu_custom_call.1} parent=1 // pred_fallthru
      _
    // Predicated region
    $region30: #{tpu_custom_call.1} parent=1 // pred_check
      _
    $region31: #{tpu_custom_call.1} parent=1 // pred_check_branch
      %56 = sbr.rel (0) target = $region33
    $region32: #{tpu_custom_call.1} parent=1 // pred_region
      %57 = dma.done [#allocation6], 4096
    $region33: #{tpu_custom_call.1} parent=1 // pred_fallthru
      _
    %v58 = vld [vmem:[#allocation2] sm:$0xff]
    %v59 = vld [vmem:[#allocation5] sm:$0xff]
    %v60 = vld [vmem:[#allocation5 + $0x8] sm:$0xff]
    %v61 = vld [vmem:[%s2] sm:$0x3]
    %v63 = vlaneseq
    %v64 = vshrl.u32 %v63, 7
    %v65 = vsub.s32 0, %v64
    %v66 = vrot.slane %v61, %v65
    %v67 = vlaneseq
    %v68 = vshrl.u32 %v67, 7
    %v69 = vsub.s32 1, %v68
    %v70 = vrot.slane %v61, %v69
    %vm73 = vcmask 64512
    %v75 = vsel %vm73, %v58, 0
    %77 = vmatprep.subr.mxu0 %v60
    %78 = vmatpush1.msra.mxu0 %v59
    %79 = vmatprep.subr.mxu0 0.0
    %80 = vmatpush1.msra.mxu0 0.0
    %81 = vmatprep.subr.mxu0 0.0
    %82 = vmatpush1.msra.mxu0 0.0
    %83 = vmatprep.subr.mxu0 0.0
    %84 = vmatpush1.msra.mxu0 0.0
    %85 = vmatprep.subr.mxu0 0.0
    %86 = vmatpush1.msra.mxu0 0.0
    %87 = vmatprep.subr.mxu0 0.0
    %88 = vmatpush1.msra.mxu0 0.0
    %89 = vmatprep.subr.mxu0 0.0
    %90 = vmatpush1.msra.mxu0 0.0
    %91 = vmatprep.subr.mxu0 0.0
    %92 = vmatpush1.msra.mxu0 0.0
    %93 = vmatprep.subr.mxu0 0.0
    %94 = vmatpush1.msra.mxu0 0.0
    %95 = vmatprep.subr.mxu0 0.0
    %96 = vmatpush1.msra.mxu0 0.0
    %97 = vmatprep.subr.mxu0 0.0
    %98 = vmatpush1.msra.mxu0 0.0
    %99 = vmatprep.subr.mxu0 0.0
    %100 = vmatpush1.msra.mxu0 0.0
    %101 = vmatprep.subr.mxu0 0.0
    %102 = vmatpush1.msra.mxu0 0.0
    %103 = vmatprep.subr.mxu0 0.0
    %104 = vmatpush1.msra.mxu0 0.0
    %105 = vmatprep.subr.mxu0 0.0
    %106 = vmatpush1.msra.mxu0 0.0
    %107 = vmatprep.subr.mxu0 0.0
    %108 = vmatpush1.msra.mxu0 0.0
    %109 = vmatprep.subr.mxu0 0.0
    %110 = vmatpush1.msra.mxu0 0.0
    %111 = vmatprep.subr.mxu0 0.0
    %112 = vmatpush1.msra.mxu0 0.0
    %113 = vmatprep.subr.mxu0 0.0
    %114 = vmatpush1.msra.mxu0 0.0
    %115 = vmatprep.subr.mxu0 0.0
    %116 = vmatpush1.msra.mxu0 0.0
    %117 = vmatprep.subr.mxu0 0.0
    %118 = vmatpush1.msra.mxu0 0.0
    %119 = vmatprep.subr.mxu0 0.0
    %120 = vmatpush1.msra.mxu0 0.0
    %121 = vmatprep.subr.mxu0 0.0
    %122 = vmatpush1.msra.mxu0 0.0
    %123 = vmatprep.subr.mxu0 0.0
    %124 = vmatpush1.msra.mxu0 0.0
    %125 = vmatprep.subr.mxu0 0.0
    %126 = vmatpush1.msra.mxu0 0.0
    %127 = vmatprep.subr.mxu0 0.0
    %128 = vmatpush1.msra.mxu0 0.0
    %129 = vmatprep.subr.mxu0 0.0
    %130 = vmatpush1.msra.mxu0 0.0
    %131 = vmatprep.subr.mxu0 0.0
    %132 = vmatpush1.msra.mxu0 0.0
    %133 = vmatprep.subr.mxu0 0.0
    %134 = vmatpush1.msra.mxu0 0.0
    %135 = vmatprep.subr.mxu0 0.0
    %136 = vmatpush1.msra.mxu0 0.0
    %137 = vmatprep.subr.mxu0 0.0
    %138 = vmatpush1.msra.mxu0 0.0
    %139 = vmatprep.subr.mxu0 0.0
    %140 = vmatpush1.msra.mxu0 0.0
    %141 = vmatprep.mubr.f32.mxu0 0.0
    %142 = vmatmul.mubr.f32.gmra.mrb[0].mxu0 %v75
    %v143 = vpop.f32.mrb[0].mxu0
    %v144 = vadd.f32 %v66, %v143
    %v145 = vpop.f32.mrb[0].mxu0
    %v146 = vadd.f32 %v70, %v145
    %147 = vdwg.mxu0
    %v148 = vmax.f32 %v144, 0.0
    %v149 = vmax.f32 %v146, 0.0
    %v150 = vld [vmem:[#allocation7] sm:$0xff]
    %v151 = vld [vmem:[#allocation7 + $0x8] sm:$0xff]
    %v152 = vld [vmem:[#allocation7 + $0x10] sm:$0xff]
    %v153 = vld [vmem:[#allocation7 + $0x18] sm:$0xff]
    %v154 = vld [vmem:[#allocation7 + $0x20] sm:$0xff]
    %v155 = vld [vmem:[#allocation7 + $0x28] sm:$0xff]
    %v156 = vld [vmem:[#allocation7 + $0x30] sm:$0xff]
    %v157 = vld [vmem:[#allocation7 + $0x38] sm:$0xff]
    %v158 = vld [vmem:[#allocation7 + $0x40] sm:$0xff]
    %v159 = vld [vmem:[#allocation7 + $0x48] sm:$0xff]
    %v160 = vld [vmem:[#allocation7 + $0x50] sm:$0xff]
    %v161 = vld [vmem:[#allocation7 + $0x58] sm:$0xff]
    %v162 = vld [vmem:[#allocation7 + $0x60] sm:$0xff]
    %v163 = vld [vmem:[#allocation7 + $0x68] sm:$0xff]
    %v164 = vld [vmem:[#allocation7 + $0x70] sm:$0xff]
    %v165 = vld [vmem:[#allocation7 + $0x78] sm:$0xff]
    %v166 = vld [vmem:[#allocation7 + $0x80] sm:$0xff]
    %v167 = vld [vmem:[#allocation7 + $0x88] sm:$0xff]
    %v168 = vld [vmem:[#allocation7 + $0x90] sm:$0xff]
    %v169 = vld [vmem:[#allocation7 + $0x98] sm:$0xff]
    %v170 = vld [vmem:[#allocation7 + $0xa0] sm:$0xff]
    %v171 = vld [vmem:[#allocation7 + $0xa8] sm:$0xff]
    %v172 = vld [vmem:[#allocation7 + $0xb0] sm:$0xff]
    %v173 = vld [vmem:[#allocation7 + $0xb8] sm:$0xff]
    %v174 = vld [vmem:[#allocation7 + $0xc0] sm:$0xff]
    %v175 = vld [vmem:[#allocation7 + $0xc8] sm:$0xff]
    %v176 = vld [vmem:[#allocation7 + $0xd0] sm:$0xff]
    %v177 = vld [vmem:[#allocation7 + $0xd8] sm:$0xff]
    %v178 = vld [vmem:[#allocation7 + $0xe0] sm:$0xff]
    %v179 = vld [vmem:[#allocation7 + $0xe8] sm:$0xff]
    %v180 = vld [vmem:[#allocation7 + $0xf0] sm:$0xff]
    %v181 = vld [vmem:[#allocation7 + $0xf8] sm:$0xff]
    %v182 = vld [vmem:[%s4] sm:$0x1]
    %v184 = vlaneseq
    %v185 = vshrl.u32 %v184, 7
    %v186 = vsub.s32 0, %v185
    %v187 = vrot.slane %v182, %v186
    %189 = vmatprep.subr.mxu0 0.0
    %190 = vmatpush1.msra.mxu0 %v150
    %191 = vmatprep.subr.mxu0 0.0
    %192 = vmatpush1.msra.mxu0 %v151
    %193 = vmatprep.subr.mxu0 0.0
    %194 = vmatpush1.msra.mxu0 %v152
    %195 = vmatprep.subr.mxu0 0.0
    %196 = vmatpush1.msra.mxu0 %v153
    %197 = vmatprep.subr.mxu0 0.0
    %198 = vmatpush1.msra.mxu0 %v154
    %199 = vmatprep.subr.mxu0 0.0
    %200 = vmatpush1.msra.mxu0 %v155
    %201 = vmatprep.subr.mxu0 0.0
    %202 = vmatpush1.msra.mxu0 %v156
    %203 = vmatprep.subr.mxu0 0.0
    %204 = vmatpush1.msra.mxu0 %v157
    %205 = vmatprep.subr.mxu0 0.0
    %206 = vmatpush1.msra.mxu0 %v158
    %207 = vmatprep.subr.mxu0 0.0
    %208 = vmatpush1.msra.mxu0 %v159
    %209 = vmatprep.subr.mxu0 0.0
    %210 = vmatpush1.msra.mxu0 %v160
    %211 = vmatprep.subr.mxu0 0.0
    %212 = vmatpush1.msra.mxu0 %v161
    %213 = vmatprep.subr.mxu0 0.0
    %214 = vmatpush1.msra.mxu0 %v162
    %215 = vmatprep.subr.mxu0 0.0
    %216 = vmatpush1.msra.mxu0 %v163
    %217 = vmatprep.subr.mxu0 0.0
    %218 = vmatpush1.msra.mxu0 %v164
    %219 = vmatprep.subr.mxu0 0.0
    %220 = vmatpush1.msra.mxu0 %v165
    %221 = vmatprep.subr.mxu0 0.0
    %222 = vmatpush1.msra.mxu0 %v166
    %223 = vmatprep.subr.mxu0 0.0
    %224 = vmatpush1.msra.mxu0 %v167
    %225 = vmatprep.subr.mxu0 0.0
    %226 = vmatpush1.msra.mxu0 %v168
    %227 = vmatprep.subr.mxu0 0.0
    %228 = vmatpush1.msra.mxu0 %v169
    %229 = vmatprep.subr.mxu0 0.0
    %230 = vmatpush1.msra.mxu0 %v170
    %231 = vmatprep.subr.mxu0 0.0
    %232 = vmatpush1.msra.mxu0 %v171
    %233 = vmatprep.subr.mxu0 0.0
    %234 = vmatpush1.msra.mxu0 %v172
    %235 = vmatprep.subr.mxu0 0.0
    %236 = vmatpush1.msra.mxu0 %v173
    %237 = vmatprep.subr.mxu0 0.0
    %238 = vmatpush1.msra.mxu0 %v174
    %239 = vmatprep.subr.mxu0 0.0
    %240 = vmatpush1.msra.mxu0 %v175
    %241 = vmatprep.subr.mxu0 0.0
    %242 = vmatpush1.msra.mxu0 %v176
    %243 = vmatprep.subr.mxu0 0.0
    %244 = vmatpush1.msra.mxu0 %v177
    %245 = vmatprep.subr.mxu0 0.0
    %246 = vmatpush1.msra.mxu0 %v178
    %247 = vmatprep.subr.mxu0 0.0
    %248 = vmatpush1.msra.mxu0 %v179
    %249 = vmatprep.subr.mxu0 0.0
    %250 = vmatpush1.msra.mxu0 %v180
    %251 = vmatprep.subr.mxu0 0.0
    %252 = vmatpush1.msra.mxu0 %v181
    %253 = vmatprep.mubr.f32.mxu0 %v149
    %254 = vmatmul.mubr.f32.gmra.mrb[0].mxu0 %v148
    %v255 = vpop.f32.mrb[0].mxu0
    %v256 = vadd.f32 %v187, %v255
    %v257 = vpop.f32.mrb[0].mxu0
    %258 = vdwg.mxu0
    %259 = vst [vmem:[#allocation8] sm:$0xff] %v256
    // Predicated region
    $region34: #{tpu_custom_call.1} parent=1 // pred_check
      _
    $region35: #{tpu_custom_call.1} parent=1 // pred_check_branch
      %261 = sbr.rel (0) target = $region37
    $region36: #{tpu_custom_call.1} parent=1 // pred_region
      %s263 = ssub.s32 128, 128
      %264 = vsyncadd [#allocation4], %s263
      %s266 = sshll.u32 [#allocation8], 4
      %s267 = int_to_ptr.vmem [resolvable:$true] %s266
      %269 = dma.vmem_to_hbm [thread:$0]  %s267, 128, %s5, [#allocation4]
    $region37: #{tpu_custom_call.1} parent=1 // pred_fallthru
      _
    // Predicated region
    $region38: #{tpu_custom_call.1} parent=1 // pred_check
      _
    $region39: #{tpu_custom_call.1} parent=1 // pred_check_branch
      %271 = sbr.rel (0) target = $region41
    $region40: #{tpu_custom_call.1} parent=1 // pred_region
      %272 = dma.done [#allocation4], 128
    $region41: #{tpu_custom_call.1} parent=1 // pred_fallthru
      _
    %273 = vsyncpa [#allocation3], 1
    %274 = vsyncpa [#allocation6], 1
    %275 = vsyncpa [#allocation4], 1

</llo_original>
